<compile_context>
chip_gen: v5e
topology: v5e:2x2
jax: 0.10.0
libtpu: 0.0.40
codegen_flags: <defaults>
</compile_context>

<pallas_src>
import functools

import jax
import jax.numpy as jnp
from jax.experimental import pallas as pl
from jax.experimental.pallas import tpu as pltpu


def _rtfm_loss_kernel(sl_ref, fn_ref, fa_ref, out_ref, *, margin, n_t, t_chunk):
    tb = fn_ref.shape[0]
    f_dim = fn_ref.shape[2]

    def temporal_sum(fref):
        # Accumulate sum over the temporal axis in f32, casting chunk-by-chunk
        # so the full (tb, T, F) block is never duplicated in f32.
        acc = jnp.zeros((tb, f_dim), jnp.float32)
        for t0 in range(0, n_t, t_chunk):          # static unroll (T is small)
            t1 = min(n_t, t0 + t_chunk)
            acc = acc + jnp.sum(fref[:, t0:t1, :].astype(jnp.float32), axis=1)
        return acc

    inv_t = 1.0 / n_t
    mean_n = temporal_sum(fn_ref) * inv_t                              # (tb, F)
    mean_a = temporal_sum(fa_ref) * inv_t                              # (tb, F)
    norm_n = jnp.sqrt(jnp.sum(mean_n * mean_n, axis=-1, keepdims=True))  # (tb, 1)
    norm_a = jnp.sqrt(jnp.sum(mean_a * mean_a, axis=-1, keepdims=True))  # (tb, 1)
    term = jnp.abs(margin - norm_a) + norm_n                             # (tb, 1)
    partial = jnp.sum(term * term, axis=0, keepdims=True)                # (1, 1)
    partial3 = partial.reshape(1, 1, 1)

    lane = jax.lax.broadcasted_iota(jnp.int32, (1, 8, 128), 2)

    @pl.when(pl.program_id(0) == 0)
    def _():
        # Classification loss only once; sl is VMEM-resident (constant block).
        sl = sl_ref[...]                     # (2, 2B): row 0 score, row 1 label
        score = sl[0:1, :]
        label = sl[1:2, :]
        # torch.nn.BCELoss clamps the logs at -100 (avoids 0 * inf NaN).
        log_p = jnp.maximum(jnp.log(score), -100.0)
        log_1mp = jnp.maximum(jnp.log(1.0 - score), -100.0)
        bce = -(label * log_p + (1.0 - label) * log_1mp)                 # (1, 2B)
        loss_cls = jnp.sum(bce, axis=1, keepdims=True) * (1.0 / bce.shape[1])
        out_ref[...] = jnp.where(
            lane == 0, partial3,
            jnp.where(lane == 1, loss_cls.reshape(1, 1, 1), 0.0))

    @pl.when(pl.program_id(0) != 0)
    def _():
        out_ref[...] = jnp.where(lane == 0, partial3, 0.0)


def rtfm_loss(score_normal, score_abnormal, nlabel, alabel, feat_n, feat_a,
              *, alpha, margin):
    """JAX/Pallas equivalent of RTFM_loss.forward. Returns (total, cls, rtfm)."""
    B, T, F = feat_n.shape
    assert feat_a.shape == (B, T, F)

    # Tiny glue: score/label concatenation stays in plain JAX.
    score = jnp.concatenate([score_normal.reshape(-1),
                             score_abnormal.reshape(-1)], axis=0)        # (2B,)
    label = jnp.concatenate([nlabel.reshape(-1),
                             alabel.reshape(-1)], axis=0)                # (2B,)
    sl = jnp.stack([score, label], axis=0).astype(jnp.float32)           # (2, 2B)
    s2 = sl.shape[1]

    dtype_bytes = feat_n.dtype.itemsize
    row_bytes = T * F * dtype_bytes
    # ~2 MiB per feature block per pipeline buffer; tb must divide B so that
    # every normal/abnormal pair stays inside one tile.
    tb_cap = max(1, (2 * 1024 * 1024) // row_bytes)
    tb = max(d for d in range(1, B + 1) if B % d == 0 and d <= tb_cap)
    num_tiles = B // tb
    # Cap the f32 temporal chunk at ~512 KiB.
    t_chunk = int(max(1, min(T, (512 * 1024) // max(1, tb * F * 4))))

    kernel = functools.partial(_rtfm_loss_kernel, margin=float(margin),
                               n_t=T, t_chunk=t_chunk)

    # Scoped-VMEM budget: two feature inputs x double-buffer, f32 chunk copies,
    # f32 working set, resident sl, output blocks -- with 2x headroom.
    vmem_needed = (2 * 2 * tb * T * F * dtype_bytes
                   + 2 * tb * t_chunk * F * 4
                   + 8 * tb * F * 4
                   + 2 * 8 * max(s2, 128) * 4
                   + 2 * 8 * 128 * 4)
    vmem_limit = int(min(48 * 1024 * 1024, max(16 * 1024 * 1024, 2 * vmem_needed)))

    cost = pl.CostEstimate(
        flops=int(4 * B * T * F + 16 * B),
        transcendentals=int(6 * B),
        bytes_accessed=int(2 * B * T * F * dtype_bytes
                           + sl.size * 4 + num_tiles * 8 * 128 * 4))

    out = pl.pallas_call(
        kernel,
        grid=(num_tiles,),
        in_specs=[
            pl.BlockSpec((2, s2), lambda i: (0, 0)),         # sl: resident
            pl.BlockSpec((tb, T, F), lambda i: (i, 0, 0)),   # feat_n tile
            pl.BlockSpec((tb, T, F), lambda i: (i, 0, 0)),   # feat_a tile
        ],
        out_specs=pl.BlockSpec((1, 8, 128), lambda i: (i, 0, 0)),
        out_shape=jax.ShapeDtypeStruct((num_tiles, 8, 128), jnp.float32),
        compiler_params=pltpu.CompilerParams(
            dimension_semantics=("parallel",),
            vmem_limit_bytes=vmem_limit),
        cost_estimate=cost,
    )(sl, feat_n, feat_a)

    # Tiny scalar combine of per-tile partials (num_tiles values).
    loss_cls = out[0, 0, 1]
    loss_rtfm = jnp.sum(out[:, 0, 0]) / B
    loss_total = loss_cls + alpha * loss_rtfm
    return loss_total, loss_cls, loss_rtfm


def _reference(score_normal, score_abnormal, nlabel, alabel, feat_n, feat_a,
               *, alpha, margin):
    score = jnp.concatenate([score_normal.reshape(-1),
                             score_abnormal.reshape(-1)], axis=0)
    label = jnp.concatenate([nlabel.reshape(-1),
                             alabel.reshape(-1)], axis=0).astype(jnp.float32)
    loss_cls = jnp.mean(-(label * jnp.log(score) + (1 - label) * jnp.log(1 - score)))
    norm_a = jnp.linalg.norm(jnp.mean(feat_a, axis=1), axis=1)
    norm_n = jnp.linalg.norm(jnp.mean(feat_n, axis=1), axis=1)
    loss_rtfm = jnp.mean((jnp.abs(margin - norm_a) + norm_n) ** 2)
    return loss_cls + alpha * loss_rtfm, loss_cls, loss_rtfm


if __name__ == "__main__":
    B, T, F = 2, 8, 32      # batch, temporal segments (top-k), feature dim
    alpha, margin = 0.0001, 100.0

    key = jax.random.PRNGKey(0)
    k1, k2, k3, k4 = jax.random.split(key, 4)

    score_normal = jax.nn.sigmoid(jax.random.normal(k1, (B, 1), jnp.float32))
    score_abnormal = jax.nn.sigmoid(jax.random.normal(k2, (B, 1), jnp.float32))
    nlabel = jnp.zeros((B,), jnp.float32)
    alabel = jnp.ones((B,), jnp.float32)
    feat_n = jax.random.normal(k3, (B, T, F), jnp.float32)
    feat_a = jax.random.normal(k4, (B, T, F), jnp.float32)

    total, cls_, rtfm = rtfm_loss(score_normal, score_abnormal, nlabel, alabel,
                                  feat_n, feat_a, alpha=alpha, margin=margin)
    jax.block_until_ready((total, cls_, rtfm))

    # Sanity check against pure-JAX reference (scores are strictly interior,
    # so the BCE -100 log clamp in the kernel never triggers here).
    r_total, r_cls, r_rtfm = _reference(score_normal, score_abnormal, nlabel,
                                        alabel, feat_n, feat_a,
                                        alpha=alpha, margin=margin)
    assert jnp.allclose(total, r_total, rtol=1e-5, atol=1e-5)
    assert jnp.allclose(cls_, r_cls, rtol=1e-5, atol=1e-5)
    assert jnp.allclose(rtfm, r_rtfm, rtol=1e-5, atol=1e-5)

    print("KERNEL_OK")
</pallas_src>

<mosaic_0001>
module attributes {stable_mosaic.version = 11 : i64} {
  func.func @_rtfm_loss_kernel(%arg0: i32, %arg1: memref<2x4xf32, #tpu.memory_space<vmem>>, %arg2: memref<2x8x32xf32, #tpu.memory_space<vmem>>, %arg3: memref<2x8x32xf32, #tpu.memory_space<vmem>>, %arg4: memref<1x8x128xf32, #tpu.memory_space<vmem>>) attributes {dimension_semantics = [#tpu.dimension_semantics<parallel>], iteration_bounds = array<i64: 1>, scalar_prefetch = 0 : i64, scratch_operands = 0 : i64, tpu.core_type = #tpu.core_type<tc>, window_params = [{pipeline_mode = #tpu.pipeline_mode<synchronous>, transform_indices = @transform_0, window_bounds = array<i64: 2, 4>}, {transform_indices = @transform_1, window_bounds = array<i64: 2, 8, 32>}, {transform_indices = @transform_2, window_bounds = array<i64: 2, 8, 32>}, {transform_indices = @transform_3, window_bounds = array<i64: 1, 8, 128>}]} {
    %cst = arith.constant 0.000000e+00 : f32
    %0 = vector.broadcast %cst : f32 to vector<2x32xf32>
    %c0 = arith.constant 0 : index
    %c0_0 = arith.constant 0 : index
    %c0_1 = arith.constant 0 : index
    %1 = vector.load %arg2[%c0, %c0_0, %c0_1] : memref<2x8x32xf32, #tpu.memory_space<vmem>>, vector<2x8x32xf32>
    %cst_2 = arith.constant dense<0.000000e+00> : vector<2x32xf32>
    %2 = vector.multi_reduction <add>, %1, %cst_2 [1] : vector<2x8x32xf32> to vector<2x32xf32>
    %3 = arith.addf %0, %2 : vector<2x32xf32>
    %cst_3 = arith.constant 1.250000e-01 : f32
    %4 = vector.broadcast %cst_3 : f32 to vector<2x32xf32>
    %5 = arith.mulf %3, %4 : vector<2x32xf32>
    %cst_4 = arith.constant 0.000000e+00 : f32
    %6 = vector.broadcast %cst_4 : f32 to vector<2x32xf32>
    %c0_5 = arith.constant 0 : index
    %c0_6 = arith.constant 0 : index
    %c0_7 = arith.constant 0 : index
    %7 = vector.load %arg3[%c0_5, %c0_6, %c0_7] : memref<2x8x32xf32, #tpu.memory_space<vmem>>, vector<2x8x32xf32>
    %cst_8 = arith.constant dense<0.000000e+00> : vector<2x32xf32>
    %8 = vector.multi_reduction <add>, %7, %cst_8 [1] : vector<2x8x32xf32> to vector<2x32xf32>
    %9 = arith.addf %6, %8 : vector<2x32xf32>
    %cst_9 = arith.constant 1.250000e-01 : f32
    %10 = vector.broadcast %cst_9 : f32 to vector<2x32xf32>
    %11 = arith.mulf %9, %10 : vector<2x32xf32>
    %12 = arith.mulf %5, %5 : vector<2x32xf32>
    %cst_10 = arith.constant dense<0.000000e+00> : vector<2xf32>
    %13 = vector.multi_reduction <add>, %12, %cst_10 [1] : vector<2x32xf32> to vector<2xf32>
    %14 = vector.shape_cast %13 : vector<2xf32> to vector<2x1xf32>
    %15 = math.sqrt %14 : vector<2x1xf32>
    %16 = arith.mulf %11, %11 : vector<2x32xf32>
    %cst_11 = arith.constant dense<0.000000e+00> : vector<2xf32>
    %17 = vector.multi_reduction <add>, %16, %cst_11 [1] : vector<2x32xf32> to vector<2xf32>
    %18 = vector.shape_cast %17 : vector<2xf32> to vector<2x1xf32>
    %19 = math.sqrt %18 : vector<2x1xf32>
    %cst_12 = arith.constant 1.000000e+02 : f32
    %20 = vector.broadcast %cst_12 : f32 to vector<2x1xf32>
    %21 = arith.subf %20, %19 : vector<2x1xf32>
    %22 = math.absf %21 : vector<2x1xf32>
    %23 = arith.addf %22, %15 : vector<2x1xf32>
    %24 = arith.mulf %23, %23 : vector<2x1xf32>
    %cst_13 = arith.constant dense<0.000000e+00> : vector<1xf32>
    %25 = vector.multi_reduction <add>, %24, %cst_13 [0] : vector<2x1xf32> to vector<1xf32>
    %26 = vector.shape_cast %25 : vector<1xf32> to vector<1x1xf32>
    %27 = vector.shape_cast %26 : vector<1x1xf32> to vector<1x1x1xf32>
    %28 = tpu.iota {dimensions = array<i32: 2>} : vector<1x8x128xi32>
    %c0_i32 = arith.constant 0 : i32
    %29 = arith.cmpi eq, %arg0, %c0_i32 : i32
    %30 = arith.extui %29 : i1 to i32
    %c0_i32_14 = arith.constant 0 : i32
    %31 = arith.cmpi ne, %30, %c0_i32_14 : i32
    scf.if %31 {
      %c0_17 = arith.constant 0 : index
      %c0_18 = arith.constant 0 : index
      %35 = vector.load %arg1[%c0_17, %c0_18] : memref<2x4xf32, #tpu.memory_space<vmem>>, vector<2x4xf32>
      %36 = vector.extract_strided_slice %35 {offsets = [0, 0], sizes = [1, 4], strides = [1, 1]} : vector<2x4xf32> to vector<1x4xf32>
      %37 = vector.extract_strided_slice %35 {offsets = [1, 0], sizes = [1, 4], strides = [1, 1]} : vector<2x4xf32> to vector<1x4xf32>
      %38 = math.log %36 : vector<1x4xf32>
      %cst_19 = arith.constant -1.000000e+02 : f32
      %39 = vector.broadcast %cst_19 : f32 to vector<1x4xf32>
      %40 = arith.maximumf %38, %39 : vector<1x4xf32>
      %cst_20 = arith.constant 1.000000e+00 : f32
      %41 = vector.broadcast %cst_20 : f32 to vector<1x4xf32>
      %42 = arith.subf %41, %36 : vector<1x4xf32>
      %43 = math.log %42 : vector<1x4xf32>
      %cst_21 = arith.constant -1.000000e+02 : f32
      %44 = vector.broadcast %cst_21 : f32 to vector<1x4xf32>
      %45 = arith.maximumf %43, %44 : vector<1x4xf32>
      %46 = arith.mulf %37, %40 : vector<1x4xf32>
      %cst_22 = arith.constant 1.000000e+00 : f32
      %47 = vector.broadcast %cst_22 : f32 to vector<1x4xf32>
      %48 = arith.subf %47, %37 : vector<1x4xf32>
      %49 = arith.mulf %48, %45 : vector<1x4xf32>
      %50 = arith.addf %46, %49 : vector<1x4xf32>
      %cst_23 = arith.constant 0.000000e+00 : f32
      %51 = vector.broadcast %cst_23 : f32 to vector<1x4xf32>
      %52 = arith.subf %51, %50 : vector<1x4xf32>
      %cst_24 = arith.constant dense<0.000000e+00> : vector<1xf32>
      %53 = vector.multi_reduction <add>, %52, %cst_24 [1] : vector<1x4xf32> to vector<1xf32>
      %54 = vector.shape_cast %53 : vector<1xf32> to vector<1x1xf32>
      %cst_25 = arith.constant 2.500000e-01 : f32
      %55 = vector.broadcast %cst_25 : f32 to vector<1x1xf32>
      %56 = arith.mulf %54, %55 : vector<1x1xf32>
      %c0_i32_26 = arith.constant 0 : i32
      %57 = vector.broadcast %c0_i32_26 : i32 to vector<1x8x128xi32>
      %58 = arith.cmpi eq, %28, %57 : vector<1x8x128xi32>
      %c1_i32 = arith.constant 1 : i32
      %59 = vector.broadcast %c1_i32 : i32 to vector<1x8x128xi32>
      %60 = arith.cmpi eq, %28, %59 : vector<1x8x128xi32>
      %61 = vector.shape_cast %56 : vector<1x1xf32> to vector<1x1x1xf32>
      %cst_27 = arith.constant 0.000000e+00 : f32
      %62 = vector.shape_cast %61 : vector<1x1x1xf32> to vector<1x1x1xf32>
      %63 = vector.broadcast %62 : vector<1x1x1xf32> to vector<1x8x128xf32>
      %64 = vector.broadcast %cst_27 : f32 to vector<1x8x128xf32>
      %65 = arith.select %60, %63, %64 : vector<1x8x128xi1>, vector<1x8x128xf32>
      %66 = vector.shape_cast %27 : vector<1x1x1xf32> to vector<1x1x1xf32>
      %67 = vector.broadcast %66 : vector<1x1x1xf32> to vector<1x8x128xf32>
      %68 = arith.select %58, %67, %65 : vector<1x8x128xi1>, vector<1x8x128xf32>
      %c0_28 = arith.constant 0 : index
      %c0_29 = arith.constant 0 : index
      %c0_30 = arith.constant 0 : index
      %69 = vector.load %arg4[%c0_28, %c0_29, %c0_30] : memref<1x8x128xf32, #tpu.memory_space<vmem>>, vector<1x8x128xf32>
      tpu.vector_store %arg4[%c0_28, %c0_29, %c0_30], %68 {strides = array<i32>} : memref<1x8x128xf32, #tpu.memory_space<vmem>>, vector<1x8x128xf32>,
    } else {
    }
    %c0_i32_15 = arith.constant 0 : i32
    %32 = arith.cmpi ne, %arg0, %c0_i32_15 : i32
    %33 = arith.extui %32 : i1 to i32
    %c0_i32_16 = arith.constant 0 : i32
    %34 = arith.cmpi ne, %33, %c0_i32_16 : i32
    scf.if %34 {
      %c0_i32_17 = arith.constant 0 : i32
      %35 = vector.broadcast %c0_i32_17 : i32 to vector<1x8x128xi32>
      %36 = arith.cmpi eq, %28, %35 : vector<1x8x128xi32>
      %cst_18 = arith.constant 0.000000e+00 : f32
      %37 = vector.shape_cast %27 : vector<1x1x1xf32> to vector<1x1x1xf32>
      %38 = vector.broadcast %37 : vector<1x1x1xf32> to vector<1x8x128xf32>
      %39 = vector.broadcast %cst_18 : f32 to vector<1x8x128xf32>
      %40 = arith.select %36, %38, %39 : vector<1x8x128xi1>, vector<1x8x128xf32>
      %c0_19 = arith.constant 0 : index
      %c0_20 = arith.constant 0 : index
      %c0_21 = arith.constant 0 : index
      %41 = vector.load %arg4[%c0_19, %c0_20, %c0_21] : memref<1x8x128xf32, #tpu.memory_space<vmem>>, vector<1x8x128xf32>
      tpu.vector_store %arg4[%c0_19, %c0_20, %c0_21], %40 {strides = array<i32>} : memref<1x8x128xf32, #tpu.memory_space<vmem>>, vector<1x8x128xf32>,
    } else {
    }
    return
  }
  func.func @transform_0(%arg0: i32) -> (i32, i32) {
    %c0_i32 = arith.constant 0 : i32
    %c0_i32_0 = arith.constant 0 : i32
    %c0_i32_1 = arith.constant 0 : i32
    return %c0_i32, %c0_i32_0 : i32, i32
  }
  func.func @transform_1(%arg0: i32) -> (i32, i32, i32) {
    %c0_i32 = arith.constant 0 : i32
    %c0_i32_0 = arith.constant 0 : i32
    %c0_i32_1 = arith.constant 0 : i32
    return %arg0, %c0_i32, %c0_i32_0 : i32, i32, i32
  }
  func.func @transform_2(%arg0: i32) -> (i32, i32, i32) {
    %c0_i32 = arith.constant 0 : i32
    %c0_i32_0 = arith.constant 0 : i32
    %c0_i32_1 = arith.constant 0 : i32
    return %arg0, %c0_i32, %c0_i32_0 : i32, i32, i32
  }
  func.func @transform_3(%arg0: i32) -> (i32, i32, i32) {
    %c0_i32 = arith.constant 0 : i32
    %c0_i32_0 = arith.constant 0 : i32
    %c0_i32_1 = arith.constant 0 : i32
    return %arg0, %c0_i32, %c0_i32_0 : i32, i32, i32
  }
}

</mosaic_0001>

<llo_original>
// kernel: tpu_custom_call.1
$region0: #{tpu_custom_call.1}
  #allocation0 [shape = 'u32[]', space=smem, size = 0x4, offset = 0x4, fixed_abs, tag = 'smem constant byte address 0x4 - core index']
  #allocation1 [shape = 'u32[72,128]{1,0:T(1,128)}', space=vmem, size = 0x9000, scoped, tag = 'internal scratch']
  %s0 = inlined_call_operand.hbm [shape: f32[2,4], index: 0, kind: input, shape index: {}]
  %s1 = inlined_call_operand.hbm [shape: f32[2,8,32], index: 1, kind: input, shape index: {}]
  %s2 = inlined_call_operand.hbm [shape: f32[2,8,32], index: 2, kind: input, shape index: {}]
  %s3 = inlined_call_operand.hbm [shape: f32[1,8,128], index: 3, kind: output, shape index: {}]
  %s4 = sld [smem:[#allocation0]]
  $region42: #{tpu_custom_call.1} parent=0
    _
  %s6 = ssub.s32 1, %s4
  %s7 = scalar_select 0, %s6, %s4
  $region1: #{tpu_custom_call.1} parent=0
    #allocation2 [shape = 'u8[1024]{0}', space=vmem, size = 0x400, scoped, tag = 'input window, operand 0, single buffered']
    #allocation3 [shape = 's32[1]{0}', space=sflag, size = 0x4, scoped, tag = 'scoped memory for tpu_custom_call.1']
    #allocation4 [shape = 's32[1]{0}', space=sflag, size = 0x4, scoped, tag = 'scoped memory for tpu_custom_call.1']
    #allocation5 [shape = 'u8[8192]{0}', space=vmem, size = 0x2000, scoped, tag = 'input window, operand 1, single buffered']
    #allocation6 [shape = 's32[1]{0}', space=sflag, size = 0x4, scoped, tag = 'scoped memory for tpu_custom_call.1']
    #allocation7 [shape = 'u8[8192]{0}', space=vmem, size = 0x2000, scoped, tag = 'input window, operand 2, single buffered']
    #allocation8 [shape = 'u8[4096]{0}', space=vmem, size = 0x1000, scoped, tag = 'output window, operand 0, single buffered']
    %8 = vsyncpa [#allocation3], 0
    %9 = vsyncpa [#allocation6], 0
    %10 = vsyncpa [#allocation4], 0
    // Predicated region
    $region2: #{tpu_custom_call.1} parent=1 // pred_check
      _
    $region3: #{tpu_custom_call.1} parent=1 // pred_check_branch
      %12 = sbr.rel (0) target = $region5
    $region4: #{tpu_custom_call.1} parent=1 // pred_region
      %14 = vsyncadd [#allocation3], 0
      %s16 = sshll.u32 %s0, 4
      %s17 = int_to_ptr.hbm [resolvable:$true] %s16
      %s18 = sshll.u32 [#allocation2], 4
      %s19 = int_to_ptr.vmem [resolvable:$true] %s18
      %21 = dma.hbm_to_vmem [thread:$0]  %s17, 32, %s19, [#allocation3]
    $region5: #{tpu_custom_call.1} parent=1 // pred_fallthru
      _
    // Predicated region
    $region6: #{tpu_custom_call.1} parent=1 // pred_check
      _
    $region7: #{tpu_custom_call.1} parent=1 // pred_check_branch
      %23 = sbr.rel (0) target = $region9
    $region8: #{tpu_custom_call.1} parent=1 // pred_region
      %25 = vsyncadd [#allocation6], 0
      %s26 = sshll.u32 %s1, 4
      %s27 = int_to_ptr.hbm [resolvable:$true] %s26
      %s28 = sshll.u32 [#allocation5], 4
      %s29 = int_to_ptr.vmem [resolvable:$true] %s28
      %34 = dma.hbm_to_vmem [thread:$0]  %s27, 256, %s29, [#allocation6], 128, 128, 8
    $region9: #{tpu_custom_call.1} parent=1 // pred_fallthru
      _
    // Predicated region
    $region10: #{tpu_custom_call.1} parent=1 // pred_check
      _
    $region11: #{tpu_custom_call.1} parent=1 // pred_check_branch
      %36 = sbr.rel (0) target = $region13
    $region12: #{tpu_custom_call.1} parent=1 // pred_region
      %38 = vsyncadd [#allocation6], 0
      %s39 = sshll.u32 %s2, 4
      %s40 = int_to_ptr.hbm [resolvable:$true] %s39
      %s41 = sshll.u32 [#allocation7], 4
      %s42 = int_to_ptr.vmem [resolvable:$true] %s41
      %47 = dma.hbm_to_vmem [thread:$0]  %s40, 256, %s42, [#allocation6], 128, 128, 8
    $region13: #{tpu_custom_call.1} parent=1 // pred_fallthru
      _
    // Predicated region
    $region14: #{tpu_custom_call.1} parent=1 // pred_check
      _
    $region15: #{tpu_custom_call.1} parent=1 // pred_check_branch
      %49 = sbr.rel (0) target = $region17
    $region16: #{tpu_custom_call.1} parent=1 // pred_region
      %51 = dma.done [#allocation3], 32
    $region17: #{tpu_custom_call.1} parent=1 // pred_fallthru
      _
    // Predicated region
    $region18: #{tpu_custom_call.1} parent=1 // pred_check
      _
    $region19: #{tpu_custom_call.1} parent=1 // pred_check_branch
      %53 = sbr.rel (0) target = $region21
    $region20: #{tpu_custom_call.1} parent=1 // pred_region
      %55 = dma.done [#allocation6], 256
    $region21: #{tpu_custom_call.1} parent=1 // pred_fallthru
      _
    // Predicated region
    $region22: #{tpu_custom_call.1} parent=1 // pred_check
      _
    $region23: #{tpu_custom_call.1} parent=1 // pred_check_branch
      %57 = sbr.rel (0) target = $region25
    $region24: #{tpu_custom_call.1} parent=1 // pred_region
      %59 = dma.done [#allocation6], 256
    $region25: #{tpu_custom_call.1} parent=1 // pred_fallthru
      _
    %v60 = vld [vmem:[#allocation5] sm:$0xff]
    %v61 = vld [vmem:[#allocation5 + $0x8] sm:$0xff]
    %vm62 = vcmask 261120
    %v63 = vsel %vm62, %v60, 0.0
    %v64 = vrot.slane %v63, 4
    %v65 = vadd.f32 %v63, %v64
    %v66 = vrot.slane %v65, 2
    %v67 = vadd.f32 %v65, %v66
    %v68 = vrot.slane %v67, 1
    %v69 = vadd.f32 %v67, %v68
    %v70 = vsel %vm62, %v61, 0.0
    %v71 = vrot.slane %v70, 4
    %v72 = vadd.f32 %v70, %v71
    %v73 = vrot.slane %v72, 2
    %v74 = vadd.f32 %v72, %v73
    %v75 = vrot.slane %v74, 1
    %v76 = vadd.f32 %v74, %v75
    %v77 = vadd.f32 %v69, 0.0
    %v78 = vadd.f32 %v76, 0.0
    %v79 = vmul.f32 %v77, 0.125
    %v80 = vmul.f32 %v78, 0.125
    %v81 = vld [vmem:[#allocation7] sm:$0xff]
    %v82 = vld [vmem:[#allocation7 + $0x8] sm:$0xff]
    %v83 = vsel %vm62, %v81, 0.0
    %v84 = vrot.slane %v83, 4
    %v85 = vadd.f32 %v83, %v84
    %v86 = vrot.slane %v85, 2
    %v87 = vadd.f32 %v85, %v86
    %v88 = vrot.slane %v87, 1
    %v89 = vadd.f32 %v87, %v88
    %v90 = vsel %vm62, %v82, 0.0
    %v91 = vrot.slane %v90, 4
    %v92 = vadd.f32 %v90, %v91
    %v93 = vrot.slane %v92, 2
    %v94 = vadd.f32 %v92, %v93
    %v95 = vrot.slane %v94, 1
    %v96 = vadd.f32 %v94, %v95
    %v97 = vadd.f32 %v89, 0.0
    %v98 = vadd.f32 %v96, 0.0
    %v99 = vmul.f32 %v97, 0.125
    %v100 = vmul.f32 %v98, 0.125
    %v101 = vmul.f32 %v79, %v79
    %v102 = vmul.f32 %v80, %v80
    %vm105 = vcmask 1041409
    %v106 = vsel %vm105, %v102, %v101
    %vm108 = vcmask 254976
    %v109 = vsel %vm108, %v106, 0.0
    %110 = vadd.xlane.f32.xlu0 %v109
    %v111 = vpop.xlane.xlu0 %110
    %v112 = vrsqrt.pop %v111
    %v113 = vmul.f32 %v112, %v111
    %v114 = vmul.f32 %v113, %v112
    %v115 = vmul.f32 0.5, %v114
    %v116 = vsub.f32 1.5, %v115
    %v117 = vmul.f32 %v112, %v116
    %v118 = vmul.f32 %v111, %v117
    %vm119 = vcmp.eq.f32.partialorder %v111, inf
    %v120 = vsel %vm119, %v111, %v118
    %vm121 = vcmp.eq.f32.partialorder %v111, 0.0
    %v122 = vand.u32 %v111, 2147483648
    %v123 = vsel %vm121, %v122, %v120
    %v124 = vmul.f32 %v99, %v99
    %v125 = vmul.f32 %v100, %v100
    %v128 = vsel %vm105, %v125, %v124
    %v130 = vsel %vm108, %v128, 0.0
    %131 = vadd.xlane.f32.xlu0 %v130
    %v132 = vpop.xlane.xlu0 %131
    %v133 = vrsqrt.pop %v132
    %v134 = vmul.f32 %v133, %v132
    %v135 = vmul.f32 %v134, %v133
    %v136 = vmul.f32 0.5, %v135
    %v137 = vsub.f32 1.5, %v136
    %v138 = vmul.f32 %v133, %v137
    %v139 = vmul.f32 %v132, %v138
    %vm140 = vcmp.eq.f32.partialorder %v132, inf
    %v141 = vsel %vm140, %v132, %v139
    %vm142 = vcmp.eq.f32.partialorder %v132, 0.0
    %v143 = vand.u32 %v132, 2147483648
    %v144 = vsel %vm142, %v143, %v141
    %v145 = vsub.f32 100.0, %v144
    %v146 = vand.u32 2147483647, %v145
    %v147 = vadd.f32 %v146, %v123
    %v148 = vmul.f32 %v147, %v147
    %vm149 = vcmask 1041408
    %v150 = vsel %vm149, %v148, 0.0
    %v151 = vrot.slane %v150, 4
    %v152 = vadd.f32 %v150, %v151
    %v153 = vrot.slane %v152, 2
    %v154 = vadd.f32 %v152, %v153
    %v155 = vrot.slane %v154, 1
    %v156 = vadd.f32 %v154, %v155
    %v157 = vlaneseq
    %v158 = vand.u32 %v157, 127
    %p159 = scmp.eq.s32.totalorder 0, 0
    // Predicated region
    $region26: #{tpu_custom_call.1} parent=1 // pred_check
      %p160 = pneg %p159
    $region27: #{tpu_custom_call.1} parent=1 // pred_check_branch
      %162 = sbr.rel (%p160) target = $region29
    $region28: #{tpu_custom_call.1} parent=1 // pred_region
      %v163 = vld [vmem:[#allocation2] sm:$0x3]
      %v164 = vlog2.pop %v163
      %v165 = vmul.f32 %v164, 0.6931472
      %v166 = vmax.f32 %v165, -100.0
      %v167 = vsub.f32 1.0, %v163
      %v168 = vlog2.pop %v167
      %v169 = vmul.f32 %v168, 0.6931472
      %v170 = vmax.f32 %v169, -100.0
      %v172 = vrot.slane %v166, 7
      %v174 = vmul.f32 %v163, %v172
      %v176 = vrot.slane %v170, 7
      %v178 = vmul.f32 %v167, %v176
      %v179 = vadd.f32 %v174, %v178
      %v180 = vsub.f32 0.0, %v179
      %vm181 = vcmask 25601
      %v182 = vsel %vm181, %v180, 0.0
      %183 = vadd.xlane.f32.xlu0 %v182
      %v184 = vpop.xlane.xlu0 %183
      %v185 = vmul.f32 %v184, 0.25
      %vm186 = vcmp.eq.s32.totalorder %v158, 0
      %vm187 = vcmp.eq.s32.totalorder %v158, 1
      %v188 = vperm.slane %v185, 1
      %v189 = vsel %vm187, %v188, 0.0
      %v190 = vsel %vm186, %v156, %v189
      %191 = vst [vmem:[#allocation8] sm:$0xff] %v190
    $region29: #{tpu_custom_call.1} parent=1 // pred_fallthru
      _
    %p192 = scmp.ne.s32.totalorder 0, 0
    // Predicated region
    $region30: #{tpu_custom_call.1} parent=1 // pred_check
      %p193 = pneg %p192
    $region31: #{tpu_custom_call.1} parent=1 // pred_check_branch
      %195 = sbr.rel (%p193) target = $region33
    $region32: #{tpu_custom_call.1} parent=1 // pred_region
      %vm196 = vcmp.eq.s32.totalorder %v158, 0
      %v197 = vsel %vm196, %v156, 0.0
      %198 = vst [vmem:[#allocation8] sm:$0xff] %v197
    $region33: #{tpu_custom_call.1} parent=1 // pred_fallthru
      _
    // Predicated region
    $region34: #{tpu_custom_call.1} parent=1 // pred_check
      _
    $region35: #{tpu_custom_call.1} parent=1 // pred_check_branch
      %200 = sbr.rel (0) target = $region37
    $region36: #{tpu_custom_call.1} parent=1 // pred_region
      %202 = vsyncadd [#allocation4], 0
      %s204 = sshll.u32 [#allocation8], 4
      %s205 = int_to_ptr.vmem [resolvable:$true] %s204
      %s206 = sshll.u32 %s3, 4
      %s207 = int_to_ptr.hbm [resolvable:$true] %s206
      %209 = dma.vmem_to_hbm [thread:$0]  %s205, 128, %s207, [#allocation4]
    $region37: #{tpu_custom_call.1} parent=1 // pred_fallthru
      _
    // Predicated region
    $region38: #{tpu_custom_call.1} parent=1 // pred_check
      _
    $region39: #{tpu_custom_call.1} parent=1 // pred_check_branch
      %211 = sbr.rel (0) target = $region41
    $region40: #{tpu_custom_call.1} parent=1 // pred_region
      %213 = dma.done [#allocation4], 128
    $region41: #{tpu_custom_call.1} parent=1 // pred_fallthru
      _
    %214 = vsyncpa [#allocation3], 1
    %215 = vsyncpa [#allocation6], 1
    %216 = vsyncpa [#allocation4], 1

</llo_original>
